<compile_context>
chip_gen: v7x
topology: tpu7x:2x2x1
jax: 0.10.0
libtpu: 0.0.40
codegen_flags: <defaults>
</compile_context>

<pallas_src>
import functools

import jax
import jax.numpy as jnp
from jax.experimental import pallas as pl
from jax.experimental.pallas import tpu as pltpu

_H1 = 32    # fc1 out features (PyTorch module)
_H2 = 128   # fc2 out features (PyTorch module)


def _round_up(x, m):
    return ((x + m - 1) // m) * m


def _mlp_kernel(x_ref, w1_ref, b1_ref, w2_ref, b2_ref, w3_ref, b3_ref, out_ref):
    # fc1 + relu
    h1 = jnp.dot(x_ref[...], w1_ref[...], preferred_element_type=jnp.float32)
    h1 = jnp.maximum(h1 + b1_ref[...], 0.0)
    # fc2 + relu (K = 32, no padding)
    h2 = jnp.dot(h1, w2_ref[...], preferred_element_type=jnp.float32)
    h2 = jnp.maximum(h2 + b2_ref[...], 0.0)
    # fc3 (N = out_size, no padding)
    logits = jnp.dot(h2, w3_ref[...], preferred_element_type=jnp.float32)
    logits = logits + b3_ref[...]
    # softmax over dim=1 (feature axis), only on the real columns
    m = jnp.max(logits, axis=1, keepdims=True)
    e = jnp.exp(logits - m)
    denom = jnp.sum(e, axis=1, keepdims=True)
    out_ref[...] = (e * pl.reciprocal(denom, approx=False)).astype(out_ref.dtype)


@functools.partial(jax.jit, static_argnames=("tile_b",))
def node_features_level_mlp(x, params, *, tile_b=2048):
    """x: (B, input_size) float32.  params: dict of w1,b1,w2,b2,w3,b3 (natural sizes)."""
    w1, b1 = params["w1"], params["b1"]
    w2, b2 = params["w2"], params["b2"]
    w3, b3 = params["w3"], params["b3"]

    B, in_size = x.shape
    h1_dim = w1.shape[1]
    h2_dim = w2.shape[1]
    out_size = w3.shape[1]

    # --- batch tiling: no padding of x; ragged last block handled by Pallas masking ---
    tile = min(tile_b, _round_up(B, 8))
    # v7x has 2 TensorCores: once tiles are reasonably big, keep >= 2 grid steps so the
    # "parallel" batch axis can actually be sharded across cores (no-op on v5e/v6e).
    if tile >= 512 and pl.cdiv(B, tile) < 2:
        tile = max(256, _round_up(pl.cdiv(B, 2), 8))
    grid = (pl.cdiv(B, tile),)

    cost = pl.CostEstimate(
        flops=2 * B * (in_size * h1_dim + h1_dim * h2_dim + h2_dim * out_size),
        transcendentals=B * out_size,
        bytes_accessed=4 * (B * (in_size + out_size)
                            + in_size * h1_dim + h1_dim * h2_dim + h2_dim * out_size
                            + h1_dim + h2_dim + out_size),
    )

    const = lambda shape: pl.BlockSpec(shape, lambda i: tuple(0 for _ in shape))

    out = pl.pallas_call(
        _mlp_kernel,
        out_shape=jax.ShapeDtypeStruct((B, out_size), jnp.float32),
        grid=grid,
        in_specs=[
            pl.BlockSpec((tile, in_size), lambda i: (i, 0)),   # x: tiled along batch
            const(w1.shape), const(b1.shape),                  # weights stay VMEM-resident
            const(w2.shape), const(b2.shape),
            const(w3.shape), const(b3.shape),
        ],
        out_specs=pl.BlockSpec((tile, out_size), lambda i: (i, 0)),
        compiler_params=pltpu.CompilerParams(
            dimension_semantics=("parallel",),  # shard batch tiles across TCs (v7x)
        ),
        cost_estimate=cost,
    )(x, w1, b1, w2, b2, w3, b3)

    return out


def init_params(key, input_size, output_size):
    """Deterministic synthetic init (PyTorch-Linear-like uniform bounds)."""
    ks = jax.random.split(key, 6)

    def linear(kw, kb, fan_in, fan_out):
        bound = 1.0 / jnp.sqrt(fan_in)
        w = jax.random.uniform(kw, (fan_in, fan_out), jnp.float32, -bound, bound)
        b = jax.random.uniform(kb, (1, fan_out), jnp.float32, -bound, bound)
        return w, b

    w1, b1 = linear(ks[0], ks[1], input_size, _H1)
    w2, b2 = linear(ks[2], ks[3], _H1, _H2)
    w3, b3 = linear(ks[4], ks[5], _H2, output_size)
    return {"w1": w1, "b1": b1, "w2": w2, "b2": b2, "w3": w3, "b3": b3}


def reference(x, p):
    h1 = jax.nn.relu(x @ p["w1"] + p["b1"])
    h2 = jax.nn.relu(h1 @ p["w2"] + p["b2"])
    logits = h2 @ p["w3"] + p["b3"]
    return jax.nn.softmax(logits, axis=1)


if __name__ == "__main__":
    key = jax.random.PRNGKey(0)
    k_x, k_p, k_x2, k_x3 = jax.random.split(key, 4)

    input_size = 64    # hidden state ++ node features ++ adjacency vector
    output_size = 16   # number of gate types
    params = init_params(k_p, input_size, output_size)

    # Small batch (module-consistent shapes), single tile.
    batch = 8
    x = jax.random.normal(k_x, (batch, input_size), jnp.float32)
    out = jax.block_until_ready(node_features_level_mlp(x, params))
    ref = reference(x, params)
    assert out.shape == (batch, output_size)
    assert jnp.allclose(out, ref, atol=1e-5, rtol=1e-5), "mismatch vs JAX reference"
    assert jnp.allclose(jnp.sum(out, axis=1), 1.0, atol=1e-5), "softmax rows must sum to 1"

    # Batch not a multiple of 8: exercises the masked ragged last block (no padding copy).
    batch2 = 11
    x2 = jax.random.normal(k_x2, (batch2, input_size), jnp.float32)
    out2 = jax.block_until_ready(node_features_level_mlp(x2, params))
    ref2 = reference(x2, params)
    assert out2.shape == (batch2, output_size)
    assert jnp.allclose(out2, ref2, atol=1e-5, rtol=1e-5), "mismatch vs JAX reference (ragged batch)"

    # Larger batch: exercises the multi-tile (grid >= 2) path with a ragged last tile.
    batch3 = 600
    x3 = jax.random.normal(k_x3, (batch3, input_size), jnp.float32)
    out3 = jax.block_until_ready(node_features_level_mlp(x3, params))
    ref3 = reference(x3, params)
    assert out3.shape == (batch3, output_size)
    assert jnp.allclose(out3, ref3, atol=1e-5, rtol=1e-5), "mismatch vs JAX reference (multi-tile)"

    print("KERNEL_OK")
</pallas_src>

<mosaic_0001>
module attributes {stable_mosaic.version = 11 : i64} {
  func.func @_mlp_kernel(%arg0: i32, %arg1: memref<8x64xf32, #tpu.memory_space<vmem>>, %arg2: memref<64x32xf32, #tpu.memory_space<vmem>>, %arg3: memref<1x32xf32, #tpu.memory_space<vmem>>, %arg4: memref<32x128xf32, #tpu.memory_space<vmem>>, %arg5: memref<1x128xf32, #tpu.memory_space<vmem>>, %arg6: memref<128x16xf32, #tpu.memory_space<vmem>>, %arg7: memref<1x16xf32, #tpu.memory_space<vmem>>, %arg8: memref<8x16xf32, #tpu.memory_space<vmem>>) attributes {dimension_semantics = [#tpu.dimension_semantics<parallel>], iteration_bounds = array<i64: 1>, scalar_prefetch = 0 : i64, scratch_operands = 0 : i64, tpu.core_type = #tpu.core_type<tc>, window_params = [{transform_indices = @transform_0, window_bounds = array<i64: 8, 64>}, {pipeline_mode = #tpu.pipeline_mode<synchronous>, transform_indices = @transform_1, window_bounds = array<i64: 64, 32>}, {pipeline_mode = #tpu.pipeline_mode<synchronous>, transform_indices = @transform_2, window_bounds = array<i64: 1, 32>}, {pipeline_mode = #tpu.pipeline_mode<synchronous>, transform_indices = @transform_3, window_bounds = array<i64: 32, 128>}, {pipeline_mode = #tpu.pipeline_mode<synchronous>, transform_indices = @transform_4, window_bounds = array<i64: 1, 128>}, {pipeline_mode = #tpu.pipeline_mode<synchronous>, transform_indices = @transform_5, window_bounds = array<i64: 128, 16>}, {pipeline_mode = #tpu.pipeline_mode<synchronous>, transform_indices = @transform_6, window_bounds = array<i64: 1, 16>}, {transform_indices = @transform_7, window_bounds = array<i64: 8, 16>}]} {
    %c0 = arith.constant 0 : index
    %c0_0 = arith.constant 0 : index
    %0 = vector.load %arg1[%c0, %c0_0] : memref<8x64xf32, #tpu.memory_space<vmem>>, vector<8x64xf32>
    %c0_1 = arith.constant 0 : index
    %c0_2 = arith.constant 0 : index
    %1 = vector.load %arg2[%c0_1, %c0_2] : memref<64x32xf32, #tpu.memory_space<vmem>>, vector<64x32xf32>
    %cst = arith.constant dense<0.000000e+00> : vector<8x32xf32>
    %2 = tpu.matmul %0, %1, %cst {dimension_numbers = #tpu.dot_dimension_numbers<[1], [0], [0], [1], [0, 0, 1, 1], [], []>} : vector<8x64xf32>, vector<64x32xf32>, vector<8x32xf32> -> vector<8x32xf32>
    %c0_3 = arith.constant 0 : index
    %c0_4 = arith.constant 0 : index
    %3 = vector.load %arg3[%c0_3, %c0_4] : memref<1x32xf32, #tpu.memory_space<vmem>>, vector<1x32xf32>
    %4 = vector.broadcast %3 : vector<1x32xf32> to vector<8x32xf32>
    %5 = arith.addf %2, %4 : vector<8x32xf32>
    %cst_5 = arith.constant 0.000000e+00 : f32
    %6 = vector.broadcast %cst_5 : f32 to vector<8x32xf32>
    %7 = arith.maximumf %5, %6 : vector<8x32xf32>
    %c0_6 = arith.constant 0 : index
    %c0_7 = arith.constant 0 : index
    %8 = vector.load %arg4[%c0_6, %c0_7] : memref<32x128xf32, #tpu.memory_space<vmem>>, vector<32x128xf32>
    %cst_8 = arith.constant dense<0.000000e+00> : vector<8x128xf32>
    %9 = tpu.matmul %7, %8, %cst_8 {dimension_numbers = #tpu.dot_dimension_numbers<[1], [0], [0], [1], [0, 0, 1, 1], [], []>} : vector<8x32xf32>, vector<32x128xf32>, vector<8x128xf32> -> vector<8x128xf32>
    %c0_9 = arith.constant 0 : index
    %c0_10 = arith.constant 0 : index
    %10 = vector.load %arg5[%c0_9, %c0_10] : memref<1x128xf32, #tpu.memory_space<vmem>>, vector<1x128xf32>
    %11 = vector.broadcast %10 : vector<1x128xf32> to vector<8x128xf32>
    %12 = arith.addf %9, %11 : vector<8x128xf32>
    %cst_11 = arith.constant 0.000000e+00 : f32
    %13 = vector.broadcast %cst_11 : f32 to vector<8x128xf32>
    %14 = arith.maximumf %12, %13 : vector<8x128xf32>
    %c0_12 = arith.constant 0 : index
    %c0_13 = arith.constant 0 : index
    %15 = vector.load %arg6[%c0_12, %c0_13] : memref<128x16xf32, #tpu.memory_space<vmem>>, vector<128x16xf32>
    %cst_14 = arith.constant dense<0.000000e+00> : vector<8x16xf32>
    %16 = tpu.matmul %14, %15, %cst_14 {dimension_numbers = #tpu.dot_dimension_numbers<[1], [0], [0], [1], [0, 0, 1, 1], [], []>} : vector<8x128xf32>, vector<128x16xf32>, vector<8x16xf32> -> vector<8x16xf32>
    %c0_15 = arith.constant 0 : index
    %c0_16 = arith.constant 0 : index
    %17 = vector.load %arg7[%c0_15, %c0_16] : memref<1x16xf32, #tpu.memory_space<vmem>>, vector<1x16xf32>
    %18 = vector.broadcast %17 : vector<1x16xf32> to vector<8x16xf32>
    %19 = arith.addf %16, %18 : vector<8x16xf32>
    %cst_17 = arith.constant dense<0xFF800000> : vector<8xf32>
    %20 = vector.multi_reduction <maximumf>, %19, %cst_17 [1] : vector<8x16xf32> to vector<8xf32>
    %21 = vector.shape_cast %20 : vector<8xf32> to vector<8x1xf32>
    %22 = vector.broadcast %21 : vector<8x1xf32> to vector<8x16xf32>
    %23 = arith.subf %19, %22 : vector<8x16xf32>
    %24 = math.exp %23 : vector<8x16xf32>
    %cst_18 = arith.constant dense<0.000000e+00> : vector<8xf32>
    %25 = vector.multi_reduction <add>, %24, %cst_18 [1] : vector<8x16xf32> to vector<8xf32>
    %26 = vector.shape_cast %25 : vector<8xf32> to vector<8x1xf32>
    %27 = tpu.reciprocal %26 : vector<8x1xf32> -> vector<8x1xf32>
    %28 = vector.broadcast %27 : vector<8x1xf32> to vector<8x16xf32>
    %29 = arith.mulf %24, %28 : vector<8x16xf32>
    %c0_19 = arith.constant 0 : index
    %c0_20 = arith.constant 0 : index
    %30 = vector.load %arg8[%c0_19, %c0_20] : memref<8x16xf32, #tpu.memory_space<vmem>>, vector<8x16xf32>
    tpu.vector_store %arg8[%c0_19, %c0_20], %29 {strides = array<i32>} : memref<8x16xf32, #tpu.memory_space<vmem>>, vector<8x16xf32>,
    return
  }
  func.func @transform_0(%arg0: i32) -> (i32, i32) {
    %c0_i32 = arith.constant 0 : i32
    %c0_i32_0 = arith.constant 0 : i32
    return %arg0, %c0_i32 : i32, i32
  }
  func.func @transform_1(%arg0: i32) -> (i32, i32) {
    %c0_i32 = arith.constant 0 : i32
    %c0_i32_0 = arith.constant 0 : i32
    %c0_i32_1 = arith.constant 0 : i32
    return %c0_i32, %c0_i32_0 : i32, i32
  }
  func.func @transform_2(%arg0: i32) -> (i32, i32) {
    %c0_i32 = arith.constant 0 : i32
    %c0_i32_0 = arith.constant 0 : i32
    %c0_i32_1 = arith.constant 0 : i32
    return %c0_i32, %c0_i32_0 : i32, i32
  }
  func.func @transform_3(%arg0: i32) -> (i32, i32) {
    %c0_i32 = arith.constant 0 : i32
    %c0_i32_0 = arith.constant 0 : i32
    %c0_i32_1 = arith.constant 0 : i32
    return %c0_i32, %c0_i32_0 : i32, i32
  }
  func.func @transform_4(%arg0: i32) -> (i32, i32) {
    %c0_i32 = arith.constant 0 : i32
    %c0_i32_0 = arith.constant 0 : i32
    %c0_i32_1 = arith.constant 0 : i32
    return %c0_i32, %c0_i32_0 : i32, i32
  }
  func.func @transform_5(%arg0: i32) -> (i32, i32) {
    %c0_i32 = arith.constant 0 : i32
    %c0_i32_0 = arith.constant 0 : i32
    %c0_i32_1 = arith.constant 0 : i32
    return %c0_i32, %c0_i32_0 : i32, i32
  }
  func.func @transform_6(%arg0: i32) -> (i32, i32) {
    %c0_i32 = arith.constant 0 : i32
    %c0_i32_0 = arith.constant 0 : i32
    %c0_i32_1 = arith.constant 0 : i32
    return %c0_i32, %c0_i32_0 : i32, i32
  }
  func.func @transform_7(%arg0: i32) -> (i32, i32) {
    %c0_i32 = arith.constant 0 : i32
    %c0_i32_0 = arith.constant 0 : i32
    return %arg0, %c0_i32 : i32, i32
  }
}

</mosaic_0001>

<llo_original>
// kernel: node_features_level_mlp.1
$region0: #{node_features_level_mlp.1}
  #allocation0 [shape = 'u32[]', space=smem, size = 0x4, offset = 0x4, fixed_abs, tag = 'smem constant byte address 0x4 - core index']
  #allocation1 [shape = 'u32[144,128]{1,0:T(1,128)}', space=vmem, size = 0x12000, scoped, tag = 'internal scratch']
  %s0 = inlined_call_operand.vmem [shape: f32[8,64], index: 0, kind: input, shape index: {}]
  %s1 = inlined_call_operand.vmem [shape: f32[64,32], index: 1, kind: input, shape index: {}]
  %s2 = inlined_call_operand.vmem [shape: f32[1,32], index: 2, kind: input, shape index: {}]
  %s3 = inlined_call_operand.vmem [shape: f32[32,128], index: 3, kind: input, shape index: {}]
  %s4 = inlined_call_operand.vmem [shape: f32[1,128], index: 4, kind: input, shape index: {}]
  %s5 = inlined_call_operand.vmem [shape: f32[128,16], index: 5, kind: input, shape index: {}]
  %s6 = inlined_call_operand.vmem [shape: f32[1,16], index: 6, kind: input, shape index: {}]
  %s7 = inlined_call_operand.hbm [shape: f32[8,16], index: 7, kind: output, shape index: {}]
  %s8 = sld [smem:[#allocation0]]
  $region38: #{node_features_level_mlp.1} parent=0
    _
  %s10 = ssub.s32 1, %s8
  %s11 = scalar_select 0, %s10, %s8
  $region1: #{node_features_level_mlp.1} parent=0
    #allocation2 [shape = 'u8[4096]{0}', space=vmem, size = 0x1000, scoped, tag = 'output window, operand 0, single buffered']
    #allocation3 [shape = 's32[1]{0}', space=sflag, size = 0x4, scoped, tag = 'scoped memory for node_features_level_mlp.1']
    %12 = vsyncpa [#allocation3], 0
    // Predicated region
    $region2: #{node_features_level_mlp.1} parent=1 // pred_check
      _
    $region3: #{node_features_level_mlp.1} parent=1 // pred_check_branch
      %14 = sbr.rel (0) target = $region5
    $region4: #{node_features_level_mlp.1} parent=1 // pred_region
      _
    $region5: #{node_features_level_mlp.1} parent=1 // pred_fallthru
      _
    // Predicated region
    $region6: #{node_features_level_mlp.1} parent=1 // pred_check
      _
    $region7: #{node_features_level_mlp.1} parent=1 // pred_check_branch
      %16 = sbr.rel (0) target = $region9
    $region8: #{node_features_level_mlp.1} parent=1 // pred_region
      _
    $region9: #{node_features_level_mlp.1} parent=1 // pred_fallthru
      _
    // Predicated region
    $region10: #{node_features_level_mlp.1} parent=1 // pred_check
      _
    $region11: #{node_features_level_mlp.1} parent=1 // pred_check_branch
      %18 = sbr.rel (0) target = $region13
    $region12: #{node_features_level_mlp.1} parent=1 // pred_region
      _
    $region13: #{node_features_level_mlp.1} parent=1 // pred_fallthru
      _
    // Predicated region
    $region14: #{node_features_level_mlp.1} parent=1 // pred_check
      _
    $region15: #{node_features_level_mlp.1} parent=1 // pred_check_branch
      %20 = sbr.rel (0) target = $region17
    $region16: #{node_features_level_mlp.1} parent=1 // pred_region
      _
    $region17: #{node_features_level_mlp.1} parent=1 // pred_fallthru
      _
    // Predicated region
    $region18: #{node_features_level_mlp.1} parent=1 // pred_check
      _
    $region19: #{node_features_level_mlp.1} parent=1 // pred_check_branch
      %22 = sbr.rel (0) target = $region21
    $region20: #{node_features_level_mlp.1} parent=1 // pred_region
      _
    $region21: #{node_features_level_mlp.1} parent=1 // pred_fallthru
      _
    // Predicated region
    $region22: #{node_features_level_mlp.1} parent=1 // pred_check
      _
    $region23: #{node_features_level_mlp.1} parent=1 // pred_check_branch
      %24 = sbr.rel (0) target = $region25
    $region24: #{node_features_level_mlp.1} parent=1 // pred_region
      _
    $region25: #{node_features_level_mlp.1} parent=1 // pred_fallthru
      _
    // Predicated region
    $region26: #{node_features_level_mlp.1} parent=1 // pred_check
      _
    $region27: #{node_features_level_mlp.1} parent=1 // pred_check_branch
      %26 = sbr.rel (0) target = $region29
    $region28: #{node_features_level_mlp.1} parent=1 // pred_region
      _
    $region29: #{node_features_level_mlp.1} parent=1 // pred_fallthru
      _
    %v27 = vld [vmem:[%s0] sm:$0xff]
    %v28 = vld [vmem:[%s1] sm:$0xff]
    %v29 = vld [vmem:[%s1 + $0x8] sm:$0xff]
    %v30 = vld [vmem:[%s1 + $0x10] sm:$0xff]
    %v31 = vld [vmem:[%s1 + $0x18] sm:$0xff]
    %v32 = vld [vmem:[%s1 + $0x20] sm:$0xff]
    %v33 = vld [vmem:[%s1 + $0x28] sm:$0xff]
    %v34 = vld [vmem:[%s1 + $0x30] sm:$0xff]
    %v35 = vld [vmem:[%s1 + $0x38] sm:$0xff]
    %v36 = vld [vmem:[%s2] sm:$0x1]
    %v38 = vlaneseq
    %v39 = vshrl.u32 %v38, 7
    %v40 = vsub.s32 0, %v39
    %v41 = vrot.slane %v36, %v40
    %vm43 = vcmask 523264
    %v45 = vsel %vm43, %v27, 0
    %47 = vmatprep.subr.mxu0 0.0
    %48 = vmatpush1.msra.mxu0 %v28
    %49 = vmatprep.subr.mxu0 0.0
    %50 = vmatpush1.msra.mxu0 %v29
    %51 = vmatprep.subr.mxu0 0.0
    %52 = vmatpush1.msra.mxu0 %v30
    %53 = vmatprep.subr.mxu0 0.0
    %54 = vmatpush1.msra.mxu0 %v31
    %55 = vmatprep.subr.mxu0 0.0
    %56 = vmatpush1.msra.mxu0 %v32
    %57 = vmatprep.subr.mxu0 0.0
    %58 = vmatpush1.msra.mxu0 %v33
    %59 = vmatprep.subr.mxu0 0.0
    %60 = vmatpush1.msra.mxu0 %v34
    %61 = vmatprep.subr.mxu0 0.0
    %62 = vmatpush1.msra.mxu0 %v35
    %63 = vmatprep.subr.mxu0 0.0
    %64 = vmatpush1.msra.mxu0 0.0
    %65 = vmatprep.subr.mxu0 0.0
    %66 = vmatpush1.msra.mxu0 0.0
    %67 = vmatprep.subr.mxu0 0.0
    %68 = vmatpush1.msra.mxu0 0.0
    %69 = vmatprep.subr.mxu0 0.0
    %70 = vmatpush1.msra.mxu0 0.0
    %71 = vmatprep.subr.mxu0 0.0
    %72 = vmatpush1.msra.mxu0 0.0
    %73 = vmatprep.subr.mxu0 0.0
    %74 = vmatpush1.msra.mxu0 0.0
    %75 = vmatprep.subr.mxu0 0.0
    %76 = vmatpush1.msra.mxu0 0.0
    %77 = vmatprep.subr.mxu0 0.0
    %78 = vmatpush1.msra.mxu0 0.0
    %79 = vmatprep.subr.mxu0 0.0
    %80 = vmatpush1.msra.mxu0 0.0
    %81 = vmatprep.subr.mxu0 0.0
    %82 = vmatpush1.msra.mxu0 0.0
    %83 = vmatprep.subr.mxu0 0.0
    %84 = vmatpush1.msra.mxu0 0.0
    %85 = vmatprep.subr.mxu0 0.0
    %86 = vmatpush1.msra.mxu0 0.0
    %87 = vmatprep.subr.mxu0 0.0
    %88 = vmatpush1.msra.mxu0 0.0
    %89 = vmatprep.subr.mxu0 0.0
    %90 = vmatpush1.msra.mxu0 0.0
    %91 = vmatprep.subr.mxu0 0.0
    %92 = vmatpush1.msra.mxu0 0.0
    %93 = vmatprep.subr.mxu0 0.0
    %94 = vmatpush1.msra.mxu0 0.0
    %95 = vmatprep.subr.mxu0 0.0
    %96 = vmatpush1.msra.mxu0 0.0
    %97 = vmatprep.subr.mxu0 0.0
    %98 = vmatpush1.msra.mxu0 0.0
    %99 = vmatprep.subr.mxu0 0.0
    %100 = vmatpush1.msra.mxu0 0.0
    %101 = vmatprep.subr.mxu0 0.0
    %102 = vmatpush1.msra.mxu0 0.0
    %103 = vmatprep.subr.mxu0 0.0
    %104 = vmatpush1.msra.mxu0 0.0
    %105 = vmatprep.subr.mxu0 0.0
    %106 = vmatpush1.msra.mxu0 0.0
    %107 = vmatprep.subr.mxu0 0.0
    %108 = vmatpush1.msra.mxu0 0.0
    %109 = vmatprep.subr.mxu0 0.0
    %110 = vmatpush1.msra.mxu0 0.0
    %111 = vmatprep.mubr.f32.mxu0 0.0
    %112 = vmatmul.mubr.f32.gmra.mrb[0].mxu0 %v45
    %v113 = vpop.f32.mrb[0].mxu0
    %v114 = vadd.f32 %v41, %v113
    %v115 = vpop.f32.mrb[0].mxu0
    %116 = vdwg.mxu0
    %v117 = vmax.f32 %v114, 0.0
    %v118 = vld [vmem:[%s3] sm:$0xff]
    %v119 = vld [vmem:[%s3 + $0x8] sm:$0xff]
    %v120 = vld [vmem:[%s3 + $0x10] sm:$0xff]
    %v121 = vld [vmem:[%s3 + $0x18] sm:$0xff]
    %v122 = vld [vmem:[%s4] sm:$0x1]
    %v124 = vlaneseq
    %v125 = vshrl.u32 %v124, 7
    %v126 = vsub.s32 0, %v125
    %v127 = vrot.slane %v122, %v126
    %vm129 = vcmask 261120
    %v131 = vsel %vm129, %v117, 0
    %133 = vmatprep.subr.mxu0 0.0
    %134 = vmatpush1.msra.mxu0 %v118
    %135 = vmatprep.subr.mxu0 0.0
    %136 = vmatpush1.msra.mxu0 %v119
    %137 = vmatprep.subr.mxu0 0.0
    %138 = vmatpush1.msra.mxu0 %v120
    %139 = vmatprep.subr.mxu0 0.0
    %140 = vmatpush1.msra.mxu0 %v121
    %141 = vmatprep.subr.mxu0 0.0
    %142 = vmatpush1.msra.mxu0 0.0
    %143 = vmatprep.subr.mxu0 0.0
    %144 = vmatpush1.msra.mxu0 0.0
    %145 = vmatprep.subr.mxu0 0.0
    %146 = vmatpush1.msra.mxu0 0.0
    %147 = vmatprep.subr.mxu0 0.0
    %148 = vmatpush1.msra.mxu0 0.0
    %149 = vmatprep.subr.mxu0 0.0
    %150 = vmatpush1.msra.mxu0 0.0
    %151 = vmatprep.subr.mxu0 0.0
    %152 = vmatpush1.msra.mxu0 0.0
    %153 = vmatprep.subr.mxu0 0.0
    %154 = vmatpush1.msra.mxu0 0.0
    %155 = vmatprep.subr.mxu0 0.0
    %156 = vmatpush1.msra.mxu0 0.0
    %157 = vmatprep.subr.mxu0 0.0
    %158 = vmatpush1.msra.mxu0 0.0
    %159 = vmatprep.subr.mxu0 0.0
    %160 = vmatpush1.msra.mxu0 0.0
    %161 = vmatprep.subr.mxu0 0.0
    %162 = vmatpush1.msra.mxu0 0.0
    %163 = vmatprep.subr.mxu0 0.0
    %164 = vmatpush1.msra.mxu0 0.0
    %165 = vmatprep.subr.mxu0 0.0
    %166 = vmatpush1.msra.mxu0 0.0
    %167 = vmatprep.subr.mxu0 0.0
    %168 = vmatpush1.msra.mxu0 0.0
    %169 = vmatprep.subr.mxu0 0.0
    %170 = vmatpush1.msra.mxu0 0.0
    %171 = vmatprep.subr.mxu0 0.0
    %172 = vmatpush1.msra.mxu0 0.0
    %173 = vmatprep.subr.mxu0 0.0
    %174 = vmatpush1.msra.mxu0 0.0
    %175 = vmatprep.subr.mxu0 0.0
    %176 = vmatpush1.msra.mxu0 0.0
    %177 = vmatprep.subr.mxu0 0.0
    %178 = vmatpush1.msra.mxu0 0.0
    %179 = vmatprep.subr.mxu0 0.0
    %180 = vmatpush1.msra.mxu0 0.0
    %181 = vmatprep.subr.mxu0 0.0
    %182 = vmatpush1.msra.mxu0 0.0
    %183 = vmatprep.subr.mxu0 0.0
    %184 = vmatpush1.msra.mxu0 0.0
    %185 = vmatprep.subr.mxu0 0.0
    %186 = vmatpush1.msra.mxu0 0.0
    %187 = vmatprep.subr.mxu0 0.0
    %188 = vmatpush1.msra.mxu0 0.0
    %189 = vmatprep.subr.mxu0 0.0
    %190 = vmatpush1.msra.mxu0 0.0
    %191 = vmatprep.subr.mxu0 0.0
    %192 = vmatpush1.msra.mxu0 0.0
    %193 = vmatprep.subr.mxu0 0.0
    %194 = vmatpush1.msra.mxu0 0.0
    %195 = vmatprep.subr.mxu0 0.0
    %196 = vmatpush1.msra.mxu0 0.0
    %197 = vmatprep.mubr.f32.mxu0 0.0
    %198 = vmatmul.mubr.f32.gmra.mrb[0].mxu0 %v131
    %v199 = vpop.f32.mrb[0].mxu0
    %v200 = vadd.f32 %v127, %v199
    %v201 = vpop.f32.mrb[0].mxu0
    %202 = vdwg.mxu0
    %v203 = vmax.f32 %v200, 0.0
    %v204 = vld [vmem:[%s5] sm:$0xff]
    %v205 = vld [vmem:[%s5 + $0x8] sm:$0xff]
    %v206 = vld [vmem:[%s5 + $0x10] sm:$0xff]
    %v207 = vld [vmem:[%s5 + $0x18] sm:$0xff]
    %v208 = vld [vmem:[%s5 + $0x20] sm:$0xff]
    %v209 = vld [vmem:[%s5 + $0x28] sm:$0xff]
    %v210 = vld [vmem:[%s5 + $0x30] sm:$0xff]
    %v211 = vld [vmem:[%s5 + $0x38] sm:$0xff]
    %v212 = vld [vmem:[%s5 + $0x40] sm:$0xff]
    %v213 = vld [vmem:[%s5 + $0x48] sm:$0xff]
    %v214 = vld [vmem:[%s5 + $0x50] sm:$0xff]
    %v215 = vld [vmem:[%s5 + $0x58] sm:$0xff]
    %v216 = vld [vmem:[%s5 + $0x60] sm:$0xff]
    %v217 = vld [vmem:[%s5 + $0x68] sm:$0xff]
    %v218 = vld [vmem:[%s5 + $0x70] sm:$0xff]
    %v219 = vld [vmem:[%s5 + $0x78] sm:$0xff]
    %v220 = vld [vmem:[%s6] sm:$0x1]
    %v222 = vlaneseq
    %v223 = vshrl.u32 %v222, 7
    %v224 = vsub.s32 0, %v223
    %v225 = vrot.slane %v220, %v224
    %227 = vmatprep.subr.mxu0 0.0
    %228 = vmatpush1.msra.mxu0 %v204
    %229 = vmatprep.subr.mxu0 0.0
    %230 = vmatpush1.msra.mxu0 %v205
    %231 = vmatprep.subr.mxu0 0.0
    %232 = vmatpush1.msra.mxu0 %v206
    %233 = vmatprep.subr.mxu0 0.0
    %234 = vmatpush1.msra.mxu0 %v207
    %235 = vmatprep.subr.mxu0 0.0
    %236 = vmatpush1.msra.mxu0 %v208
    %237 = vmatprep.subr.mxu0 0.0
    %238 = vmatpush1.msra.mxu0 %v209
    %239 = vmatprep.subr.mxu0 0.0
    %240 = vmatpush1.msra.mxu0 %v210
    %241 = vmatprep.subr.mxu0 0.0
    %242 = vmatpush1.msra.mxu0 %v211
    %243 = vmatprep.subr.mxu0 0.0
    %244 = vmatpush1.msra.mxu0 %v212
    %245 = vmatprep.subr.mxu0 0.0
    %246 = vmatpush1.msra.mxu0 %v213
    %247 = vmatprep.subr.mxu0 0.0
    %248 = vmatpush1.msra.mxu0 %v214
    %249 = vmatprep.subr.mxu0 0.0
    %250 = vmatpush1.msra.mxu0 %v215
    %251 = vmatprep.subr.mxu0 0.0
    %252 = vmatpush1.msra.mxu0 %v216
    %253 = vmatprep.subr.mxu0 0.0
    %254 = vmatpush1.msra.mxu0 %v217
    %255 = vmatprep.subr.mxu0 0.0
    %256 = vmatpush1.msra.mxu0 %v218
    %257 = vmatprep.subr.mxu0 0.0
    %258 = vmatpush1.msra.mxu0 %v219
    %259 = vmatprep.subr.mxu0 0.0
    %260 = vmatpush1.msra.mxu0 0.0
    %261 = vmatprep.subr.mxu0 0.0
    %262 = vmatpush1.msra.mxu0 0.0
    %263 = vmatprep.subr.mxu0 0.0
    %264 = vmatpush1.msra.mxu0 0.0
    %265 = vmatprep.subr.mxu0 0.0
    %266 = vmatpush1.msra.mxu0 0.0
    %267 = vmatprep.subr.mxu0 0.0
    %268 = vmatpush1.msra.mxu0 0.0
    %269 = vmatprep.subr.mxu0 0.0
    %270 = vmatpush1.msra.mxu0 0.0
    %271 = vmatprep.subr.mxu0 0.0
    %272 = vmatpush1.msra.mxu0 0.0
    %273 = vmatprep.subr.mxu0 0.0
    %274 = vmatpush1.msra.mxu0 0.0
    %275 = vmatprep.subr.mxu0 0.0
    %276 = vmatpush1.msra.mxu0 0.0
    %277 = vmatprep.subr.mxu0 0.0
    %278 = vmatpush1.msra.mxu0 0.0
    %279 = vmatprep.subr.mxu0 0.0
    %280 = vmatpush1.msra.mxu0 0.0
    %281 = vmatprep.subr.mxu0 0.0
    %282 = vmatpush1.msra.mxu0 0.0
    %283 = vmatprep.subr.mxu0 0.0
    %284 = vmatpush1.msra.mxu0 0.0
    %285 = vmatprep.subr.mxu0 0.0
    %286 = vmatpush1.msra.mxu0 0.0
    %287 = vmatprep.subr.mxu0 0.0
    %288 = vmatpush1.msra.mxu0 0.0
    %289 = vmatprep.subr.mxu0 0.0
    %290 = vmatpush1.msra.mxu0 0.0
    %291 = vmatprep.mubr.f32.mxu0 0.0
    %292 = vmatmul.mubr.f32.gmra.mrb[0].mxu0 %v203
    %v293 = vpop.f32.mrb[0].mxu0
    %v294 = vadd.f32 %v225, %v293
    %v295 = vpop.f32.mrb[0].mxu0
    %296 = vdwg.mxu0
    %vm297 = vcmask 130048
    %v298 = vsel %vm297, %v294, -inf
    %299 = vmax.xlane.f32.xlu0 %v298
    %v300 = vpop.xlane.xlu0 %299
    %v301 = vsub.f32 %v294, %v300
    %v302 = vmul.f32 %v301, 1.442695
    %v303 = vpow.pop %v302
    %v304 = vsel %vm297, %v303, 0.0
    %305 = vadd.xlane.f32.xlu0 %v304
    %v306 = vpop.xlane.xlu0 %305
    %v307 = vrcp.pop %v306
    %v308 = vmul.f32 %v303, %v307
    %309 = vst.msk [vmem:[#allocation2] sm:$0xff] %vm297, %v308
    // Predicated region
    $region30: #{node_features_level_mlp.1} parent=1 // pred_check
      _
    $region31: #{node_features_level_mlp.1} parent=1 // pred_check_branch
      %311 = sbr.rel (0) target = $region33
    $region32: #{node_features_level_mlp.1} parent=1 // pred_region
      %s313 = ssub.s32 128, 128
      %314 = vsyncadd [#allocation3], %s313
      %s316 = sshll.u32 [#allocation2], 4
      %s317 = int_to_ptr.vmem [resolvable:$true] %s316
      %319 = dma.vmem_to_hbm [thread:$0]  %s317, 128, %s7, [#allocation3]
    $region33: #{node_features_level_mlp.1} parent=1 // pred_fallthru
      _
    // Predicated region
    $region34: #{node_features_level_mlp.1} parent=1 // pred_check
      _
    $region35: #{node_features_level_mlp.1} parent=1 // pred_check_branch
      %321 = sbr.rel (0) target = $region37
    $region36: #{node_features_level_mlp.1} parent=1 // pred_region
      %322 = dma.done [#allocation3], 128
    $region37: #{node_features_level_mlp.1} parent=1 // pred_fallthru
      _
    %323 = vsyncpa [#allocation3], 1

</llo_original>
